<compile_context>
chip_gen: v6e
topology: v6e:2x2x1
jax: 0.10.0
libtpu: 0.0.40
codegen_flags: <defaults>
</compile_context>

<pallas_src>
import jax
import jax.numpy as jnp
from jax.experimental import pallas as pl
from jax.experimental.pallas import tpu as pltpu

NEG_SLOPE = 0.01   # nn.LeakyReLU default
BN_EPS = 1e-5      # nn.BatchNorm2d default


# ------------------------------------------------------------ fused kernel --
def _fused_mi_kernel(pt_ref, wt_ref, bconv_ref, wsp_ref, emask_ref, mg_ref,
                     bfc_ref, eps_ref, loss_ref, z_ref):
    m_rows = pt_ref.shape[1]           # M = B*Ho*Wo  (lane axis)
    two_c = wt_ref.shape[0]            # 2*C  (rgb channels | depth channels)
    n_ch = two_c // 2
    s_sz = wsp_ref.shape[0]            # S = Ho*Wo
    latent = mg_ref.shape[1]           # L
    batch = eps_ref.shape[0] // 2      # B

    # ---- conv (block-diagonal matmul, both streams at once) + BatchNorm2d
    #      (training-mode batch stats, centered variance, gamma=1 / beta=0)
    #      + LeakyReLU(0.01).  y is a single (2C, M) = (8, 128) f32 vreg. ----
    y = jnp.dot(wt_ref[...], pt_ref[...],
                preferred_element_type=jnp.float32) + bconv_ref[...]   # (2C, M)
    inv_m = 1.0 / m_rows
    mean = jnp.sum(y, axis=1, keepdims=True) * inv_m                   # (2C, 1)
    d = y - mean
    var = jnp.sum(d * d, axis=1, keepdims=True) * inv_m                # biased
    yn = d * jax.lax.rsqrt(var + BN_EPS)
    feat = jnp.maximum(yn, NEG_SLOPE * yn)                             # (2C, M)

    # ---- fc + tanh, all on the MXU (no lane slices / broadcasts) ----------
    # mu[b, l] = sum_{c, s} feat[c, b*S + s] * wfc[c, s, l] + bias[l]
    #   G = feat_b @ Wsp        : G[c, c'*L+l] = sum_s feat_b[c, s]*wfc[c', s, l]
    #   H = (G * Emask) @ Mg    : H[c, l]      = G[c, c*L+l]   (diagonal blocks)
    #   mu row = per-stream sublane sum of H
    iota_b = jax.lax.broadcasted_iota(jnp.int32, (batch, 1), 0)        # (B, 1)
    mu_r_pre = jnp.zeros((batch, latent), jnp.float32)
    mu_d_pre = jnp.zeros((batch, latent), jnp.float32)
    for b in range(batch):                        # static unroll, B is tiny
        fb = feat[:, b * s_sz:(b + 1) * s_sz]                          # (2C, S)
        g = jnp.dot(fb, wsp_ref[...], preferred_element_type=jnp.float32)
        h = jnp.dot(g * emask_ref[...], mg_ref[...],
                    preferred_element_type=jnp.float32)                # (2C, L)
        row_r = jnp.sum(h[:n_ch], axis=0, keepdims=True)               # (1, L)
        row_d = jnp.sum(h[n_ch:], axis=0, keepdims=True)
        put = (iota_b == b).astype(jnp.float32)                        # (B, 1)
        mu_r_pre = mu_r_pre + put * row_r
        mu_d_pre = mu_d_pre + put * row_d
    mu_r = jnp.tanh(mu_r_pre + bfc_ref[0:1, :])                        # (B, L)
    mu_d = jnp.tanh(mu_d_pre + bfc_ref[1:2, :])
    # Same fc applied twice to the same input in the reference => logvar == mu.
    lv_r, lv_d = mu_r, mu_d

    # ---- reparametrize: z = eps * exp(0.5*logvar) + mu ----------------------
    std_r = jnp.exp(0.5 * lv_r)
    std_d = jnp.exp(0.5 * lv_d)
    z_r = eps_ref[:batch, :] * std_r + mu_r
    z_d = eps_ref[batch:, :] * std_d + mu_d

    # ---- bidirectional KL of Independent(Normal(mu, exp(logvar)), 1) --------
    # scale = exp(logvar); log-ratio terms cancel in the two-direction sum.
    s2_r = std_r * std_r               # exp(logvar_r)
    s2_d = std_d * std_d
    v_r = s2_r * s2_r                  # scale_r^2 = exp(2*logvar_r)
    v_d = s2_d * s2_d
    dmu = mu_r - mu_d
    dmu2 = dmu * dmu
    kl_elem = (v_r + dmu2) / (2.0 * v_d) + (v_d + dmu2) / (2.0 * v_r) - 1.0
    bi_di_kld = jnp.sum(kl_elem) * (1.0 / batch)   # mean-over-batch, both ways

    # ---- BCELoss(reduction='sum') both directions via log-sigmoid/softplus
    #      identities, with PyTorch's -100 clamp on the log terms. -----------
    def softplus(x):
        return jnp.maximum(x, 0.0) + jnp.log1p(jnp.exp(-jnp.abs(x)))

    logp_r = -jnp.minimum(softplus(-z_r), 100.0)      # log(sigmoid(z_r))
    log1mp_r = -jnp.minimum(softplus(z_r), 100.0)     # log(1 - sigmoid(z_r))
    logp_d = -jnp.minimum(softplus(-z_d), 100.0)
    log1mp_d = -jnp.minimum(softplus(z_d), 100.0)
    t_r = jnp.exp(logp_r)                             # sigmoid(z_r) (target)
    t_d = jnp.exp(logp_d)                             # sigmoid(z_d) (target)

    ce_rgb_depth = -jnp.sum(t_d * logp_r + (1.0 - t_d) * log1mp_r)
    ce_depth_rgb = -jnp.sum(t_r * logp_d + (1.0 - t_r) * log1mp_d)

    loss_ref[0, 0] = ce_rgb_depth + ce_depth_rgb - bi_di_kld
    # One lane-/sublane-packed output slab: rows [0:B] = z_rgb, [B:2B] = z_depth
    z_ref[0:batch, :] = z_r
    z_ref[batch:2 * batch, :] = z_d


def fused_mi_loss(pt, wt, bconv, wsp, emask, mg, bfc, eps_cat):
    two_b, latent = eps_cat.shape
    vmem = pl.BlockSpec(memory_space=pltpu.MemorySpace.VMEM)
    return pl.pallas_call(
        _fused_mi_kernel,
        out_shape=(jax.ShapeDtypeStruct((1, 1), jnp.float32),        # loss
                   jax.ShapeDtypeStruct((two_b, latent), jnp.float32)),  # z slab
        in_specs=[vmem] * 8,
        out_specs=(pl.BlockSpec(memory_space=pltpu.MemorySpace.SMEM),
                   vmem),
    )(pt, wt, bconv, wsp, emask, mg, bfc, eps_cat)


# ------------------------------------------------------------------- glue --
def im2col_t(x, kh=4, kw=4, stride=2, pad=1):
    """NCHW -> TRANSPOSED patch matrix (Cin*kh*kw, B*Ho*Wo).
    Rows ordered (cin, ki, kj); columns ordered (b, ho, wo).  Only one small
    transpose of the input (Cin<->B) is materialized before the kernel."""
    b, cin, h, w = x.shape
    ho = (h + 2 * pad - kh) // stride + 1
    wo = (w + 2 * pad - kw) // stride + 1
    xt = jnp.transpose(x, (1, 0, 2, 3))                    # (Cin, B, H, W)
    xp = jnp.pad(xt, ((0, 0), (0, 0), (pad, pad), (pad, pad)))
    slabs = [xp[:, :, i:i + stride * ho:stride, j:j + stride * wo:stride]
             for i in range(kh) for j in range(kw)]        # each (Cin, B, Ho, Wo)
    p = jnp.stack(slabs, axis=1)                           # (Cin, kh*kw, B, Ho, Wo)
    return p.reshape(cin * kh * kw, b * ho * wo), ho, wo


def pack_params(params, out_h, out_w):
    """One-time host-side re-layout (nothing here scales with the batch size):
      wt    (2C, 2K)    block-diagonal transposed conv weight (rgb | depth)
      bconv (2C, 1)     conv bias column (broadcasts over the lane axis)
      wsp   (S, 2C*L)   per-channel fc weights: wsp[s, c*L+l] = wfc[c, s, l]
      emask (2C, 2C*L)  0/1 selector of the matching-channel block
      mg    (2C*L, L)   diagonal-gather matmul: mg[c*L+l, l'] = (l == l')
      bfc   (2, L)      fc biases (row 0 = rgb, row 1 = depth)"""
    n_ch = params["w1"].shape[0]
    latent = params["fc_rgb_w"].shape[1]
    s = out_h * out_w
    two_c = 2 * n_ch

    w1r = params["w1"].reshape(n_ch, -1)            # (C, Cin*16), cols (cin,ki,kj)
    w2r = params["w2"].reshape(n_ch, -1)
    zero = jnp.zeros_like(w1r)
    wt = jnp.concatenate(
        [jnp.concatenate([w1r, zero], axis=1),
         jnp.concatenate([zero, w2r], axis=1)], axis=0)               # (2C, 2K)
    bconv = jnp.concatenate([params["b1"], params["b2"]]).reshape(two_c, 1)

    wfc3 = jnp.concatenate(
        [params["fc_rgb_w"].reshape(n_ch, s, latent),
         params["fc_depth_w"].reshape(n_ch, s, latent)], axis=0)      # (2C, S, L)
    wsp = jnp.transpose(wfc3, (1, 0, 2)).reshape(s, two_c * latent)   # (S, 2C*L)
    emask = (jnp.arange(two_c * latent)[None, :] // latent
             == jnp.arange(two_c)[:, None]).astype(jnp.float32)       # (2C, 2C*L)
    mg = (jnp.arange(two_c * latent)[:, None] % latent
          == jnp.arange(latent)[None, :]).astype(jnp.float32)         # (2C*L, L)
    bfc = jnp.stack([params["fc_rgb_b"], params["fc_depth_b"]])       # (2, L)

    return {"wt": wt, "bconv": bconv, "wsp": wsp, "emask": emask,
            "mg": mg, "bfc": bfc}


def mutual_info_reg_forward(rgb, depth, packed, eps_rgb, eps_depth):
    batch = rgb.shape[0]
    x_cat = jnp.concatenate([rgb, depth], axis=1)          # (B, 2*Cin, H, W)
    pt, _, _ = im2col_t(x_cat)                             # (2*Cin*16, B*Ho*Wo)
    eps_cat = jnp.concatenate([eps_rgb, eps_depth], axis=0)  # (2B, L)
    loss, z_cat = fused_mi_loss(
        pt, packed["wt"], packed["bconv"], packed["wsp"], packed["emask"],
        packed["mg"], packed["bfc"], eps_cat)
    return loss[0, 0], z_cat[:batch], z_cat[batch:]


# ------------------------------------------------------------------- main --
if __name__ == "__main__":
    # input_channels=4, channels=4, latent_size=8, 16x16 feature maps, batch=2
    B, Cin, C, H, W, L = 2, 4, 4, 16, 16, 8
    Ho, Wo = H // 2, W // 2

    key = jax.random.PRNGKey(0)
    ks = jax.random.split(key, 12)

    rgb = jax.random.normal(ks[0], (B, Cin, H, W), jnp.float32)
    depth = jax.random.normal(ks[1], (B, Cin, H, W), jnp.float32)

    # Deterministic synthetic parameters (shapes per the module's __init__).
    params = {
        "w1": 0.1 * jax.random.normal(ks[2], (C, Cin, 4, 4), jnp.float32),
        "b1": 0.1 * jax.random.normal(ks[3], (C,), jnp.float32),
        "w2": 0.1 * jax.random.normal(ks[4], (C, Cin, 4, 4), jnp.float32),
        "b2": 0.1 * jax.random.normal(ks[5], (C,), jnp.float32),
        # fc layers are created fresh (CUDA-random) inside forward() in the
        # PyTorch module; here deterministic, stored as W.T = (C*Ho*Wo, L).
        "fc_rgb_w": 0.05 * jax.random.normal(ks[6], (C * Ho * Wo, L), jnp.float32),
        "fc_rgb_b": 0.05 * jax.random.normal(ks[7], (L,), jnp.float32),
        "fc_depth_w": 0.05 * jax.random.normal(ks[8], (C * Ho * Wo, L), jnp.float32),
        "fc_depth_b": 0.05 * jax.random.normal(ks[9], (L,), jnp.float32),
    }

    # torch.cuda.FloatTensor(...).normal_() equivalent reparametrization noise.
    eps_rgb = jax.random.normal(ks[10], (B, L), jnp.float32)
    eps_depth = jax.random.normal(ks[11], (B, L), jnp.float32)

    packed = pack_params(params, Ho, Wo)        # one-time host weight re-layout

    fwd = jax.jit(mutual_info_reg_forward)
    loss, z_rgb, z_depth = fwd(rgb, depth, packed, eps_rgb, eps_depth)
    jax.block_until_ready((loss, z_rgb, z_depth))
    print("KERNEL_OK")
</pallas_src>

<mosaic_0001>
module attributes {stable_mosaic.version = 11 : i64} {
  func.func @_fused_mi_kernel(%arg0: memref<128x128xf32, #tpu.memory_space<vmem>>, %arg1: memref<8x128xf32, #tpu.memory_space<vmem>>, %arg2: memref<8x1xf32, #tpu.memory_space<vmem>>, %arg3: memref<64x64xf32, #tpu.memory_space<vmem>>, %arg4: memref<8x64xf32, #tpu.memory_space<vmem>>, %arg5: memref<64x8xf32, #tpu.memory_space<vmem>>, %arg6: memref<2x8xf32, #tpu.memory_space<vmem>>, %arg7: memref<4x8xf32, #tpu.memory_space<vmem>>, %arg8: memref<1x1xf32, #tpu.memory_space<smem>>, %arg9: memref<4x8xf32, #tpu.memory_space<vmem>>) attributes {dimension_semantics = [], scalar_prefetch = 0 : i64, scratch_operands = 0 : i64, tpu.core_type = #tpu.core_type<tc>} {
    %c0 = arith.constant 0 : index
    %c0_0 = arith.constant 0 : index
    %0 = vector.load %arg1[%c0, %c0_0] : memref<8x128xf32, #tpu.memory_space<vmem>>, vector<8x128xf32>
    %c0_1 = arith.constant 0 : index
    %c0_2 = arith.constant 0 : index
    %1 = vector.load %arg0[%c0_1, %c0_2] : memref<128x128xf32, #tpu.memory_space<vmem>>, vector<128x128xf32>
    %cst = arith.constant dense<0.000000e+00> : vector<8x128xf32>
    %2 = tpu.matmul %0, %1, %cst {dimension_numbers = #tpu.dot_dimension_numbers<[1], [0], [0], [1], [0, 0, 1, 1], [], []>} : vector<8x128xf32>, vector<128x128xf32>, vector<8x128xf32> -> vector<8x128xf32>
    %c0_3 = arith.constant 0 : index
    %c0_4 = arith.constant 0 : index
    %3 = vector.load %arg2[%c0_3, %c0_4] : memref<8x1xf32, #tpu.memory_space<vmem>>, vector<8x1xf32>
    %4 = vector.broadcast %3 : vector<8x1xf32> to vector<8x128xf32>
    %5 = arith.addf %2, %4 : vector<8x128xf32>
    %cst_5 = arith.constant dense<0.000000e+00> : vector<8xf32>
    %6 = vector.multi_reduction <add>, %5, %cst_5 [1] : vector<8x128xf32> to vector<8xf32>
    %7 = vector.shape_cast %6 : vector<8xf32> to vector<8x1xf32>
    %cst_6 = arith.constant 7.812500e-03 : f32
    %8 = vector.broadcast %cst_6 : f32 to vector<8x1xf32>
    %9 = arith.mulf %7, %8 : vector<8x1xf32>
    %10 = vector.broadcast %9 : vector<8x1xf32> to vector<8x128xf32>
    %11 = arith.subf %5, %10 : vector<8x128xf32>
    %12 = arith.mulf %11, %11 : vector<8x128xf32>
    %cst_7 = arith.constant dense<0.000000e+00> : vector<8xf32>
    %13 = vector.multi_reduction <add>, %12, %cst_7 [1] : vector<8x128xf32> to vector<8xf32>
    %14 = vector.shape_cast %13 : vector<8xf32> to vector<8x1xf32>
    %cst_8 = arith.constant 7.812500e-03 : f32
    %15 = vector.broadcast %cst_8 : f32 to vector<8x1xf32>
    %16 = arith.mulf %14, %15 : vector<8x1xf32>
    %cst_9 = arith.constant 9.99999974E-6 : f32
    %17 = vector.broadcast %cst_9 : f32 to vector<8x1xf32>
    %18 = arith.addf %16, %17 : vector<8x1xf32>
    %19 = math.rsqrt %18 : vector<8x1xf32>
    %20 = vector.broadcast %19 : vector<8x1xf32> to vector<8x128xf32>
    %21 = arith.mulf %11, %20 : vector<8x128xf32>
    %cst_10 = arith.constant 0.00999999977 : f32
    %22 = vector.broadcast %cst_10 : f32 to vector<8x128xf32>
    %23 = arith.mulf %22, %21 : vector<8x128xf32>
    %24 = arith.maximumf %21, %23 : vector<8x128xf32>
    %25 = tpu.iota {dimensions = array<i32: 0>} : vector<2x1xi32>
    %cst_11 = arith.constant 0.000000e+00 : f32
    %26 = vector.broadcast %cst_11 : f32 to vector<2x8xf32>
    %cst_12 = arith.constant 0.000000e+00 : f32
    %27 = vector.broadcast %cst_12 : f32 to vector<2x8xf32>
    %28 = vector.extract_strided_slice %24 {offsets = [0, 0], sizes = [8, 64], strides = [1, 1]} : vector<8x128xf32> to vector<8x64xf32>
    %c0_13 = arith.constant 0 : index
    %c0_14 = arith.constant 0 : index
    %29 = vector.load %arg3[%c0_13, %c0_14] : memref<64x64xf32, #tpu.memory_space<vmem>>, vector<64x64xf32>
    %cst_15 = arith.constant dense<0.000000e+00> : vector<8x64xf32>
    %30 = tpu.matmul %28, %29, %cst_15 {dimension_numbers = #tpu.dot_dimension_numbers<[1], [0], [0], [1], [0, 0, 1, 1], [], []>} : vector<8x64xf32>, vector<64x64xf32>, vector<8x64xf32> -> vector<8x64xf32>
    %c0_16 = arith.constant 0 : index
    %c0_17 = arith.constant 0 : index
    %31 = vector.load %arg4[%c0_16, %c0_17] : memref<8x64xf32, #tpu.memory_space<vmem>>, vector<8x64xf32>
    %32 = arith.mulf %30, %31 : vector<8x64xf32>
    %c0_18 = arith.constant 0 : index
    %c0_19 = arith.constant 0 : index
    %33 = vector.load %arg5[%c0_18, %c0_19] : memref<64x8xf32, #tpu.memory_space<vmem>>, vector<64x8xf32>
    %cst_20 = arith.constant dense<0.000000e+00> : vector<8x8xf32>
    %34 = tpu.matmul %32, %33, %cst_20 {dimension_numbers = #tpu.dot_dimension_numbers<[1], [0], [0], [1], [0, 0, 1, 1], [], []>} : vector<8x64xf32>, vector<64x8xf32>, vector<8x8xf32> -> vector<8x8xf32>
    %35 = vector.extract_strided_slice %34 {offsets = [0, 0], sizes = [4, 8], strides = [1, 1]} : vector<8x8xf32> to vector<4x8xf32>
    %cst_21 = arith.constant dense<0.000000e+00> : vector<8xf32>
    %36 = vector.multi_reduction <add>, %35, %cst_21 [0] : vector<4x8xf32> to vector<8xf32>
    %37 = vector.shape_cast %36 : vector<8xf32> to vector<1x8xf32>
    %38 = vector.extract_strided_slice %34 {offsets = [4, 0], sizes = [4, 8], strides = [1, 1]} : vector<8x8xf32> to vector<4x8xf32>
    %cst_22 = arith.constant dense<0.000000e+00> : vector<8xf32>
    %39 = vector.multi_reduction <add>, %38, %cst_22 [0] : vector<4x8xf32> to vector<8xf32>
    %40 = vector.shape_cast %39 : vector<8xf32> to vector<1x8xf32>
    %c0_i32 = arith.constant 0 : i32
    %41 = vector.broadcast %c0_i32 : i32 to vector<2x1xi32>
    %42 = arith.cmpi eq, %25, %41 : vector<2x1xi32>
    %43 = arith.extui %42 : vector<2x1xi1> to vector<2x1xi32>
    %44 = arith.sitofp %43 : vector<2x1xi32> to vector<2x1xf32>
    %45 = vector.broadcast %44 : vector<2x1xf32> to vector<2x8xf32>
    %46 = vector.broadcast %37 : vector<1x8xf32> to vector<2x8xf32>
    %47 = arith.mulf %45, %46 : vector<2x8xf32>
    %48 = arith.addf %26, %47 : vector<2x8xf32>
    %49 = vector.broadcast %44 : vector<2x1xf32> to vector<2x8xf32>
    %50 = vector.broadcast %40 : vector<1x8xf32> to vector<2x8xf32>
    %51 = arith.mulf %49, %50 : vector<2x8xf32>
    %52 = arith.addf %27, %51 : vector<2x8xf32>
    %53 = vector.extract_strided_slice %24 {offsets = [0, 64], sizes = [8, 64], strides = [1, 1]} : vector<8x128xf32> to vector<8x64xf32>
    %c0_23 = arith.constant 0 : index
    %c0_24 = arith.constant 0 : index
    %54 = vector.load %arg3[%c0_23, %c0_24] : memref<64x64xf32, #tpu.memory_space<vmem>>, vector<64x64xf32>
    %cst_25 = arith.constant dense<0.000000e+00> : vector<8x64xf32>
    %55 = tpu.matmul %53, %54, %cst_25 {dimension_numbers = #tpu.dot_dimension_numbers<[1], [0], [0], [1], [0, 0, 1, 1], [], []>} : vector<8x64xf32>, vector<64x64xf32>, vector<8x64xf32> -> vector<8x64xf32>
    %c0_26 = arith.constant 0 : index
    %c0_27 = arith.constant 0 : index
    %56 = vector.load %arg4[%c0_26, %c0_27] : memref<8x64xf32, #tpu.memory_space<vmem>>, vector<8x64xf32>
    %57 = arith.mulf %55, %56 : vector<8x64xf32>
    %c0_28 = arith.constant 0 : index
    %c0_29 = arith.constant 0 : index
    %58 = vector.load %arg5[%c0_28, %c0_29] : memref<64x8xf32, #tpu.memory_space<vmem>>, vector<64x8xf32>
    %cst_30 = arith.constant dense<0.000000e+00> : vector<8x8xf32>
    %59 = tpu.matmul %57, %58, %cst_30 {dimension_numbers = #tpu.dot_dimension_numbers<[1], [0], [0], [1], [0, 0, 1, 1], [], []>} : vector<8x64xf32>, vector<64x8xf32>, vector<8x8xf32> -> vector<8x8xf32>
    %60 = vector.extract_strided_slice %59 {offsets = [0, 0], sizes = [4, 8], strides = [1, 1]} : vector<8x8xf32> to vector<4x8xf32>
    %cst_31 = arith.constant dense<0.000000e+00> : vector<8xf32>
    %61 = vector.multi_reduction <add>, %60, %cst_31 [0] : vector<4x8xf32> to vector<8xf32>
    %62 = vector.shape_cast %61 : vector<8xf32> to vector<1x8xf32>
    %63 = vector.extract_strided_slice %59 {offsets = [4, 0], sizes = [4, 8], strides = [1, 1]} : vector<8x8xf32> to vector<4x8xf32>
    %cst_32 = arith.constant dense<0.000000e+00> : vector<8xf32>
    %64 = vector.multi_reduction <add>, %63, %cst_32 [0] : vector<4x8xf32> to vector<8xf32>
    %65 = vector.shape_cast %64 : vector<8xf32> to vector<1x8xf32>
    %c1_i32 = arith.constant 1 : i32
    %66 = vector.broadcast %c1_i32 : i32 to vector<2x1xi32>
    %67 = arith.cmpi eq, %25, %66 : vector<2x1xi32>
    %68 = arith.extui %67 : vector<2x1xi1> to vector<2x1xi32>
    %69 = arith.sitofp %68 : vector<2x1xi32> to vector<2x1xf32>
    %70 = vector.broadcast %69 : vector<2x1xf32> to vector<2x8xf32>
    %71 = vector.broadcast %62 : vector<1x8xf32> to vector<2x8xf32>
    %72 = arith.mulf %70, %71 : vector<2x8xf32>
    %73 = arith.addf %48, %72 : vector<2x8xf32>
    %74 = vector.broadcast %69 : vector<2x1xf32> to vector<2x8xf32>
    %75 = vector.broadcast %65 : vector<1x8xf32> to vector<2x8xf32>
    %76 = arith.mulf %74, %75 : vector<2x8xf32>
    %77 = arith.addf %52, %76 : vector<2x8xf32>
    %c0_33 = arith.constant 0 : index
    %c0_34 = arith.constant 0 : index
    %78 = vector.load %arg6[%c0_33, %c0_34] : memref<2x8xf32, #tpu.memory_space<vmem>>, vector<1x8xf32>
    %79 = vector.broadcast %78 : vector<1x8xf32> to vector<2x8xf32>
    %80 = arith.addf %73, %79 : vector<2x8xf32>
    %81 = math.tanh %80 : vector<2x8xf32>
    %c1 = arith.constant 1 : index
    %c0_35 = arith.constant 0 : index
    %82 = vector.load %arg6[%c1, %c0_35] : memref<2x8xf32, #tpu.memory_space<vmem>>, vector<1x8xf32>
    %83 = vector.broadcast %82 : vector<1x8xf32> to vector<2x8xf32>
    %84 = arith.addf %77, %83 : vector<2x8xf32>
    %85 = math.tanh %84 : vector<2x8xf32>
    %cst_36 = arith.constant 5.000000e-01 : f32
    %86 = vector.broadcast %cst_36 : f32 to vector<2x8xf32>
    %87 = arith.mulf %86, %81 : vector<2x8xf32>
    %88 = math.exp %87 : vector<2x8xf32>
    %cst_37 = arith.constant 5.000000e-01 : f32
    %89 = vector.broadcast %cst_37 : f32 to vector<2x8xf32>
    %90 = arith.mulf %89, %85 : vector<2x8xf32>
    %91 = math.exp %90 : vector<2x8xf32>
    %c0_38 = arith.constant 0 : index
    %c0_39 = arith.constant 0 : index
    %92 = vector.load %arg7[%c0_38, %c0_39] : memref<4x8xf32, #tpu.memory_space<vmem>>, vector<2x8xf32>
    %93 = arith.mulf %92, %88 : vector<2x8xf32>
    %94 = arith.addf %93, %81 : vector<2x8xf32>
    %c2 = arith.constant 2 : index
    %c0_40 = arith.constant 0 : index
    %95 = vector.load %arg7[%c2, %c0_40] : memref<4x8xf32, #tpu.memory_space<vmem>>, vector<2x8xf32>
    %96 = arith.mulf %95, %91 : vector<2x8xf32>
    %97 = arith.addf %96, %85 : vector<2x8xf32>
    %98 = arith.mulf %88, %88 : vector<2x8xf32>
    %99 = arith.mulf %91, %91 : vector<2x8xf32>
    %100 = arith.mulf %98, %98 : vector<2x8xf32>
    %101 = arith.mulf %99, %99 : vector<2x8xf32>
    %102 = arith.subf %81, %85 : vector<2x8xf32>
    %103 = arith.mulf %102, %102 : vector<2x8xf32>
    %104 = arith.addf %100, %103 : vector<2x8xf32>
    %cst_41 = arith.constant 2.000000e+00 : f32
    %105 = vector.broadcast %cst_41 : f32 to vector<2x8xf32>
    %106 = arith.mulf %105, %101 : vector<2x8xf32>
    %107 = arith.divf %104, %106 : vector<2x8xf32>
    %108 = arith.addf %101, %103 : vector<2x8xf32>
    %cst_42 = arith.constant 2.000000e+00 : f32
    %109 = vector.broadcast %cst_42 : f32 to vector<2x8xf32>
    %110 = arith.mulf %109, %100 : vector<2x8xf32>
    %111 = arith.divf %108, %110 : vector<2x8xf32>
    %112 = arith.addf %107, %111 : vector<2x8xf32>
    %cst_43 = arith.constant 1.000000e+00 : f32
    %113 = vector.broadcast %cst_43 : f32 to vector<2x8xf32>
    %114 = arith.subf %112, %113 : vector<2x8xf32>
    %115 = vector.shape_cast %114 : vector<2x8xf32> to vector<1x2x8xf32>
    %cst_44 = arith.constant dense<0.000000e+00> : vector<1xf32>
    %116 = vector.multi_reduction <add>, %115, %cst_44 [1, 2] : vector<1x2x8xf32> to vector<1xf32>
    %117 = vector.shape_cast %116 : vector<1xf32> to vector<1x1x1xf32>
    %118 = vector.extract %117[0, 0, 0] : f32 from vector<1x1x1xf32>
    %cst_45 = arith.constant 5.000000e-01 : f32
    %119 = arith.mulf %118, %cst_45 : f32
    %cst_46 = arith.constant 0.000000e+00 : f32
    %120 = vector.broadcast %cst_46 : f32 to vector<2x8xf32>
    %121 = arith.subf %120, %94 : vector<2x8xf32>
    %cst_47 = arith.constant 0.000000e+00 : f32
    %122 = vector.broadcast %cst_47 : f32 to vector<2x8xf32>
    %123 = arith.maximumf %121, %122 : vector<2x8xf32>
    %124 = math.absf %121 : vector<2x8xf32>
    %cst_48 = arith.constant 0.000000e+00 : f32
    %125 = vector.broadcast %cst_48 : f32 to vector<2x8xf32>
    %126 = arith.subf %125, %124 : vector<2x8xf32>
    %127 = math.exp %126 : vector<2x8xf32>
    %128 = math.log1p %127 : vector<2x8xf32>
    %129 = arith.addf %123, %128 : vector<2x8xf32>
    %cst_49 = arith.constant 1.000000e+02 : f32
    %130 = vector.broadcast %cst_49 : f32 to vector<2x8xf32>
    %131 = arith.minimumf %129, %130 : vector<2x8xf32>
    %cst_50 = arith.constant 0.000000e+00 : f32
    %132 = vector.broadcast %cst_50 : f32 to vector<2x8xf32>
    %133 = arith.subf %132, %131 : vector<2x8xf32>
    %cst_51 = arith.constant 0.000000e+00 : f32
    %134 = vector.broadcast %cst_51 : f32 to vector<2x8xf32>
    %135 = arith.maximumf %94, %134 : vector<2x8xf32>
    %136 = math.absf %94 : vector<2x8xf32>
    %cst_52 = arith.constant 0.000000e+00 : f32
    %137 = vector.broadcast %cst_52 : f32 to vector<2x8xf32>
    %138 = arith.subf %137, %136 : vector<2x8xf32>
    %139 = math.exp %138 : vector<2x8xf32>
    %140 = math.log1p %139 : vector<2x8xf32>
    %141 = arith.addf %135, %140 : vector<2x8xf32>
    %cst_53 = arith.constant 1.000000e+02 : f32
    %142 = vector.broadcast %cst_53 : f32 to vector<2x8xf32>
    %143 = arith.minimumf %141, %142 : vector<2x8xf32>
    %cst_54 = arith.constant 0.000000e+00 : f32
    %144 = vector.broadcast %cst_54 : f32 to vector<2x8xf32>
    %145 = arith.subf %144, %143 : vector<2x8xf32>
    %cst_55 = arith.constant 0.000000e+00 : f32
    %146 = vector.broadcast %cst_55 : f32 to vector<2x8xf32>
    %147 = arith.subf %146, %97 : vector<2x8xf32>
    %cst_56 = arith.constant 0.000000e+00 : f32
    %148 = vector.broadcast %cst_56 : f32 to vector<2x8xf32>
    %149 = arith.maximumf %147, %148 : vector<2x8xf32>
    %150 = math.absf %147 : vector<2x8xf32>
    %cst_57 = arith.constant 0.000000e+00 : f32
    %151 = vector.broadcast %cst_57 : f32 to vector<2x8xf32>
    %152 = arith.subf %151, %150 : vector<2x8xf32>
    %153 = math.exp %152 : vector<2x8xf32>
    %154 = math.log1p %153 : vector<2x8xf32>
    %155 = arith.addf %149, %154 : vector<2x8xf32>
    %cst_58 = arith.constant 1.000000e+02 : f32
    %156 = vector.broadcast %cst_58 : f32 to vector<2x8xf32>
    %157 = arith.minimumf %155, %156 : vector<2x8xf32>
    %cst_59 = arith.constant 0.000000e+00 : f32
    %158 = vector.broadcast %cst_59 : f32 to vector<2x8xf32>
    %159 = arith.subf %158, %157 : vector<2x8xf32>
    %cst_60 = arith.constant 0.000000e+00 : f32
    %160 = vector.broadcast %cst_60 : f32 to vector<2x8xf32>
    %161 = arith.maximumf %97, %160 : vector<2x8xf32>
    %162 = math.absf %97 : vector<2x8xf32>
    %cst_61 = arith.constant 0.000000e+00 : f32
    %163 = vector.broadcast %cst_61 : f32 to vector<2x8xf32>
    %164 = arith.subf %163, %162 : vector<2x8xf32>
    %165 = math.exp %164 : vector<2x8xf32>
    %166 = math.log1p %165 : vector<2x8xf32>
    %167 = arith.addf %161, %166 : vector<2x8xf32>
    %cst_62 = arith.constant 1.000000e+02 : f32
    %168 = vector.broadcast %cst_62 : f32 to vector<2x8xf32>
    %169 = arith.minimumf %167, %168 : vector<2x8xf32>
    %cst_63 = arith.constant 0.000000e+00 : f32
    %170 = vector.broadcast %cst_63 : f32 to vector<2x8xf32>
    %171 = arith.subf %170, %169 : vector<2x8xf32>
    %172 = math.exp %133 : vector<2x8xf32>
    %173 = math.exp %159 : vector<2x8xf32>
    %174 = arith.mulf %173, %133 : vector<2x8xf32>
    %cst_64 = arith.constant 1.000000e+00 : f32
    %175 = vector.broadcast %cst_64 : f32 to vector<2x8xf32>
    %176 = arith.subf %175, %173 : vector<2x8xf32>
    %177 = arith.mulf %176, %145 : vector<2x8xf32>
    %178 = arith.addf %174, %177 : vector<2x8xf32>
    %179 = vector.shape_cast %178 : vector<2x8xf32> to vector<1x2x8xf32>
    %cst_65 = arith.constant dense<0.000000e+00> : vector<1xf32>
    %180 = vector.multi_reduction <add>, %179, %cst_65 [1, 2] : vector<1x2x8xf32> to vector<1xf32>
    %181 = vector.shape_cast %180 : vector<1xf32> to vector<1x1x1xf32>
    %182 = vector.extract %181[0, 0, 0] : f32 from vector<1x1x1xf32>
    %cst_66 = arith.constant 0.000000e+00 : f32
    %183 = arith.subf %cst_66, %182 : f32
    %184 = arith.mulf %172, %159 : vector<2x8xf32>
    %cst_67 = arith.constant 1.000000e+00 : f32
    %185 = vector.broadcast %cst_67 : f32 to vector<2x8xf32>
    %186 = arith.subf %185, %172 : vector<2x8xf32>
    %187 = arith.mulf %186, %171 : vector<2x8xf32>
    %188 = arith.addf %184, %187 : vector<2x8xf32>
    %189 = vector.shape_cast %188 : vector<2x8xf32> to vector<1x2x8xf32>
    %cst_68 = arith.constant dense<0.000000e+00> : vector<1xf32>
    %190 = vector.multi_reduction <add>, %189, %cst_68 [1, 2] : vector<1x2x8xf32> to vector<1xf32>
    %191 = vector.shape_cast %190 : vector<1xf32> to vector<1x1x1xf32>
    %192 = vector.extract %191[0, 0, 0] : f32 from vector<1x1x1xf32>
    %cst_69 = arith.constant 0.000000e+00 : f32
    %193 = arith.subf %cst_69, %192 : f32
    %194 = arith.addf %183, %193 : f32
    %195 = arith.subf %194, %119 : f32
    %c0_70 = arith.constant 0 : index
    %c0_71 = arith.constant 0 : index
    %196 = memref.load %arg8[%c0_70, %c0_71] : memref<1x1xf32, #tpu.memory_space<smem>>
    memref.store %195, %arg8[%c0_70, %c0_71] : memref<1x1xf32, #tpu.memory_space<smem>>
    %c0_72 = arith.constant 0 : index
    %c0_73 = arith.constant 0 : index
    %197 = vector.load %arg9[%c0_72, %c0_73] : memref<4x8xf32, #tpu.memory_space<vmem>>, vector<2x8xf32>
    tpu.vector_store %arg9[%c0_72, %c0_73], %94 {strides = array<i32>} : memref<4x8xf32, #tpu.memory_space<vmem>>, vector<2x8xf32>,
    %c2_74 = arith.constant 2 : index
    %c0_75 = arith.constant 0 : index
    %198 = vector.load %arg9[%c2_74, %c0_75] : memref<4x8xf32, #tpu.memory_space<vmem>>, vector<2x8xf32>
    tpu.vector_store %arg9[%c2_74, %c0_75], %97 {strides = array<i32>} : memref<4x8xf32, #tpu.memory_space<vmem>>, vector<2x8xf32>,
    return
  }
}

</mosaic_0001>

<llo_original>
// kernel: mutual_info_reg_forward.1
$region0: #{mutual_info_reg_forward.1}
  #allocation0 [shape = 'u32[]', space=smem, size = 0x4, offset = 0x4, fixed_abs, tag = 'smem constant byte address 0x4 - core index']
  #allocation1 [shape = 'u32[144,128]{1,0:T(1,128)}', space=vmem, size = 0x12000, scoped, tag = 'internal scratch']
  %s0 = inlined_call_operand.vmem [shape: f32[128,128], index: 0, kind: input, shape index: {}]
  %s1 = inlined_call_operand.vmem [shape: f32[8,128], index: 1, kind: input, shape index: {}]
  %s2 = inlined_call_operand.vmem [shape: f32[8,1], index: 2, kind: input, shape index: {}]
  %s3 = inlined_call_operand.vmem [shape: f32[64,64], index: 3, kind: input, shape index: {}]
  %s4 = inlined_call_operand.vmem [shape: f32[8,64], index: 4, kind: input, shape index: {}]
  %s5 = inlined_call_operand.vmem [shape: f32[64,8], index: 5, kind: input, shape index: {}]
  %s6 = inlined_call_operand.vmem [shape: f32[2,8], index: 6, kind: input, shape index: {}]
  %s7 = inlined_call_operand.vmem [shape: f32[4,8], index: 7, kind: input, shape index: {}]
  %s8 = inlined_call_operand.hbm [shape: f32[1,1], index: 8, kind: output, shape index: {0}]
  %s9 = inlined_call_operand.vmem [shape: f32[4,8], index: 9, kind: output, shape index: {1}]
  %10 = xla_tuple %s8, %s9
  %s11 = sld [smem:[#allocation0]]
  $region50: #{mutual_info_reg_forward.1} parent=0
    _
  %s13 = ssub.s32 1, %s11
  %s14 = scalar_select 0, %s13, %s11
  $region1: #{mutual_info_reg_forward.1} parent=0
    #allocation2 [shape = 'u8[512]{0}', space=smem, size = 0x200, scoped, tag = 'output window, operand 0, single buffered']
    #allocation3 [shape = 's32[1]{0}', space=sflag, size = 0x4, scoped, tag = 'scoped memory for mutual_info_reg_forward.1']
    %15 = vsyncpa [#allocation3], 0
    // Predicated region
    $region2: #{mutual_info_reg_forward.1} parent=1 // pred_check
      _
    $region3: #{mutual_info_reg_forward.1} parent=1 // pred_check_branch
      %17 = sbr.rel (0) target = $region5
    $region4: #{mutual_info_reg_forward.1} parent=1 // pred_region
      _
    $region5: #{mutual_info_reg_forward.1} parent=1 // pred_fallthru
      _
    // Predicated region
    $region6: #{mutual_info_reg_forward.1} parent=1 // pred_check
      _
    $region7: #{mutual_info_reg_forward.1} parent=1 // pred_check_branch
      %19 = sbr.rel (0) target = $region9
    $region8: #{mutual_info_reg_forward.1} parent=1 // pred_region
      _
    $region9: #{mutual_info_reg_forward.1} parent=1 // pred_fallthru
      _
    // Predicated region
    $region10: #{mutual_info_reg_forward.1} parent=1 // pred_check
      _
    $region11: #{mutual_info_reg_forward.1} parent=1 // pred_check_branch
      %21 = sbr.rel (0) target = $region13
    $region12: #{mutual_info_reg_forward.1} parent=1 // pred_region
      _
    $region13: #{mutual_info_reg_forward.1} parent=1 // pred_fallthru
      _
    // Predicated region
    $region14: #{mutual_info_reg_forward.1} parent=1 // pred_check
      _
    $region15: #{mutual_info_reg_forward.1} parent=1 // pred_check_branch
      %23 = sbr.rel (0) target = $region17
    $region16: #{mutual_info_reg_forward.1} parent=1 // pred_region
      _
    $region17: #{mutual_info_reg_forward.1} parent=1 // pred_fallthru
      _
    // Predicated region
    $region18: #{mutual_info_reg_forward.1} parent=1 // pred_check
      _
    $region19: #{mutual_info_reg_forward.1} parent=1 // pred_check_branch
      %25 = sbr.rel (0) target = $region21
    $region20: #{mutual_info_reg_forward.1} parent=1 // pred_region
      _
    $region21: #{mutual_info_reg_forward.1} parent=1 // pred_fallthru
      _
    // Predicated region
    $region22: #{mutual_info_reg_forward.1} parent=1 // pred_check
      _
    $region23: #{mutual_info_reg_forward.1} parent=1 // pred_check_branch
      %27 = sbr.rel (0) target = $region25
    $region24: #{mutual_info_reg_forward.1} parent=1 // pred_region
      _
    $region25: #{mutual_info_reg_forward.1} parent=1 // pred_fallthru
      _
    // Predicated region
    $region26: #{mutual_info_reg_forward.1} parent=1 // pred_check
      _
    $region27: #{mutual_info_reg_forward.1} parent=1 // pred_check_branch
      %29 = sbr.rel (0) target = $region29
    $region28: #{mutual_info_reg_forward.1} parent=1 // pred_region
      _
    $region29: #{mutual_info_reg_forward.1} parent=1 // pred_fallthru
      _
    // Predicated region
    $region30: #{mutual_info_reg_forward.1} parent=1 // pred_check
      _
    $region31: #{mutual_info_reg_forward.1} parent=1 // pred_check_branch
      %31 = sbr.rel (0) target = $region33
    $region32: #{mutual_info_reg_forward.1} parent=1 // pred_region
      _
    $region33: #{mutual_info_reg_forward.1} parent=1 // pred_fallthru
      _
    %v32 = vld [vmem:[%s1] sm:$0xff]
    %v33 = vld [vmem:[%s0] sm:$0xff]
    %v34 = vld [vmem:[%s0 + $0x8] sm:$0xff]
    %v35 = vld [vmem:[%s0 + $0x10] sm:$0xff]
    %v36 = vld [vmem:[%s0 + $0x18] sm:$0xff]
    %v37 = vld [vmem:[%s0 + $0x20] sm:$0xff]
    %v38 = vld [vmem:[%s0 + $0x28] sm:$0xff]
    %v39 = vld [vmem:[%s0 + $0x30] sm:$0xff]
    %v40 = vld [vmem:[%s0 + $0x38] sm:$0xff]
    %v41 = vld [vmem:[%s0 + $0x40] sm:$0xff]
    %v42 = vld [vmem:[%s0 + $0x48] sm:$0xff]
    %v43 = vld [vmem:[%s0 + $0x50] sm:$0xff]
    %v44 = vld [vmem:[%s0 + $0x58] sm:$0xff]
    %v45 = vld [vmem:[%s0 + $0x60] sm:$0xff]
    %v46 = vld [vmem:[%s0 + $0x68] sm:$0xff]
    %v47 = vld [vmem:[%s0 + $0x70] sm:$0xff]
    %v48 = vld [vmem:[%s0 + $0x78] sm:$0xff]
    %v49 = vld [vmem:[%s2] sm:$0xff]
    %51 = vset.pattern.permute.xlu0 0
    %52 = vperm.xlu0 %51, %v49
    %v53 = vpop.permute.xlu0 %52
    %55 = vmatprep.subr.mxu0 0.0
    %56 = vmatpush1.msra.mxu0 %v48
    %57 = vmatprep.subr.mxu0 0.0
    %58 = vmatpush1.msra.mxu0 %v47
    %59 = vmatprep.subr.mxu0 0.0
    %60 = vmatpush1.msra.mxu0 %v46
    %61 = vmatprep.subr.mxu0 0.0
    %62 = vmatpush1.msra.mxu0 %v45
    %63 = vmatprep.subr.mxu0 0.0
    %64 = vmatpush1.msra.mxu0 %v44
    %65 = vmatprep.subr.mxu0 0.0
    %66 = vmatpush1.msra.mxu0 %v43
    %67 = vmatprep.subr.mxu0 0.0
    %68 = vmatpush1.msra.mxu0 %v42
    %69 = vmatprep.subr.mxu0 0.0
    %70 = vmatpush1.msra.mxu0 %v41
    %71 = vmatprep.subr.mxu0 0.0
    %72 = vmatpush1.msra.mxu0 %v40
    %73 = vmatprep.subr.mxu0 0.0
    %74 = vmatpush1.msra.mxu0 %v39
    %75 = vmatprep.subr.mxu0 0.0
    %76 = vmatpush1.msra.mxu0 %v38
    %77 = vmatprep.subr.mxu0 0.0
    %78 = vmatpush1.msra.mxu0 %v37
    %79 = vmatprep.subr.mxu0 0.0
    %80 = vmatpush1.msra.mxu0 %v36
    %81 = vmatprep.subr.mxu0 0.0
    %82 = vmatpush1.msra.mxu0 %v35
    %83 = vmatprep.subr.mxu0 0.0
    %84 = vmatpush1.msra.mxu0 %v34
    %85 = vmatprep.subr.mxu0 0.0
    %86 = vmatpush1.msra.mxu0 %v33
    %87 = vmatprep.subr.mxu0 0.0
    %88 = vmatpush2.msra.mxu0 0.0
    %89 = vmatprep.subr.mxu0 0.0
    %90 = vmatpush2.msra.mxu0 0.0
    %91 = vmatprep.subr.mxu0 0.0
    %92 = vmatpush2.msra.mxu0 0.0
    %93 = vmatprep.subr.mxu0 0.0
    %94 = vmatpush2.msra.mxu0 0.0
    %95 = vmatprep.subr.mxu0 0.0
    %96 = vmatpush2.msra.mxu0 0.0
    %97 = vmatprep.subr.mxu0 0.0
    %98 = vmatpush2.msra.mxu0 0.0
    %99 = vmatprep.subr.mxu0 0.0
    %100 = vmatpush2.msra.mxu0 0.0
    %101 = vmatprep.subr.mxu0 0.0
    %102 = vmatpush2.msra.mxu0 0.0
    %103 = vmatprep.subr.mxu0 0.0
    %104 = vmatpush2.msra.mxu0 0.0
    %105 = vmatprep.subr.mxu0 0.0
    %106 = vmatpush2.msra.mxu0 0.0
    %107 = vmatprep.subr.mxu0 0.0
    %108 = vmatpush2.msra.mxu0 0.0
    %109 = vmatprep.subr.mxu0 0.0
    %110 = vmatpush2.msra.mxu0 0.0
    %111 = vmatprep.subr.mxu0 0.0
    %112 = vmatpush2.msra.mxu0 0.0
    %113 = vmatprep.subr.mxu0 0.0
    %114 = vmatpush2.msra.mxu0 0.0
    %115 = vmatprep.subr.mxu0 0.0
    %116 = vmatpush2.msra.mxu0 0.0
    %117 = vmatprep.subr.mxu0 0.0
    %118 = vmatpush2.msra.mxu0 0.0
    %119 = vmatprep.mubr.f32.mxu0 0.0
    %120 = vmatmul.mubr.f32.gmra.mxu0 %v32
    %v121 = vpop.f32.mrf.mxu0
    %v122 = vadd.f32 %v53, %v121
    %v123 = vpop.f32.mrf.mxu0
    %124 = vdwg.mxu0
    %125 = vadd.xlane.f32.xlu0 %v122
    %v126 = vpop.xlane.xlu0 %125
    %v127 = vmul.f32 %v126, 0.0078125
    %v128 = vsub.f32 %v122, %v127
    %v129 = vmul.f32 %v128, %v128
    %130 = vadd.xlane.f32.xlu0 %v129
    %v131 = vpop.xlane.xlu0 %130
    %v132 = vmul.f32 %v131, 0.0078125
    %v133 = vadd.f32 %v132, 1e-05
    %v134 = vrsqrt.pop %v133
    %v135 = vmul.f32 %v128, %v134
    %v136 = vmul.f32 %v135, 0.01
    %v137 = vmax.f32 %v135, %v136
    %v138 = vlaneseq
    %v139 = vshrl.u32 %v138, 7
    %v140 = vld [vmem:[%s3] sm:$0xff]
    %v141 = vld [vmem:[%s3 + $0x8] sm:$0xff]
    %v142 = vld [vmem:[%s3 + $0x10] sm:$0xff]
    %v143 = vld [vmem:[%s3 + $0x18] sm:$0xff]
    %v144 = vld [vmem:[%s3 + $0x20] sm:$0xff]
    %v145 = vld [vmem:[%s3 + $0x28] sm:$0xff]
    %v146 = vld [vmem:[%s3 + $0x30] sm:$0xff]
    %v147 = vld [vmem:[%s3 + $0x38] sm:$0xff]
    %vm148 = vcmask 523264
    %v150 = vsel %vm148, %v137, 0
    %152 = vmatprep.subr.mxu0 0.0
    %153 = vmatpush1.msra.mxu0 0.0
    %154 = vmatprep.subr.mxu0 0.0
    %155 = vmatpush1.msra.mxu0 0.0
    %156 = vmatprep.subr.mxu0 0.0
    %157 = vmatpush1.msra.mxu0 0.0
    %158 = vmatprep.subr.mxu0 0.0
    %159 = vmatpush1.msra.mxu0 0.0
    %160 = vmatprep.subr.mxu0 0.0
    %161 = vmatpush1.msra.mxu0 0.0
    %162 = vmatprep.subr.mxu0 0.0
    %163 = vmatpush1.msra.mxu0 0.0
    %164 = vmatprep.subr.mxu0 0.0
    %165 = vmatpush1.msra.mxu0 0.0
    %166 = vmatprep.subr.mxu0 0.0
    %167 = vmatpush1.msra.mxu0 0.0
    %168 = vmatprep.subr.mxu0 0.0
    %169 = vmatpush1.msra.mxu0 %v147
    %170 = vmatprep.subr.mxu0 0.0
    %171 = vmatpush1.msra.mxu0 %v146
    %172 = vmatprep.subr.mxu0 0.0
    %173 = vmatpush1.msra.mxu0 %v145
    %174 = vmatprep.subr.mxu0 0.0
    %175 = vmatpush1.msra.mxu0 %v144
    %176 = vmatprep.subr.mxu0 0.0
    %177 = vmatpush1.msra.mxu0 %v143
    %178 = vmatprep.subr.mxu0 0.0
    %179 = vmatpush1.msra.mxu0 %v142
    %180 = vmatprep.subr.mxu0 0.0
    %181 = vmatpush1.msra.mxu0 %v141
    %182 = vmatprep.subr.mxu0 0.0
    %183 = vmatpush1.msra.mxu0 %v140
    %184 = vmatprep.subr.mxu0 0.0
    %185 = vmatpush2.msra.mxu0 0.0
    %186 = vmatprep.subr.mxu0 0.0
    %187 = vmatpush2.msra.mxu0 0.0
    %188 = vmatprep.subr.mxu0 0.0
    %189 = vmatpush2.msra.mxu0 0.0
    %190 = vmatprep.subr.mxu0 0.0
    %191 = vmatpush2.msra.mxu0 0.0
    %192 = vmatprep.subr.mxu0 0.0
    %193 = vmatpush2.msra.mxu0 0.0
    %194 = vmatprep.subr.mxu0 0.0
    %195 = vmatpush2.msra.mxu0 0.0
    %196 = vmatprep.subr.mxu0 0.0
    %197 = vmatpush2.msra.mxu0 0.0
    %198 = vmatprep.subr.mxu0 0.0
    %199 = vmatpush2.msra.mxu0 0.0
    %200 = vmatprep.subr.mxu0 0.0
    %201 = vmatpush2.msra.mxu0 0.0
    %202 = vmatprep.subr.mxu0 0.0
    %203 = vmatpush2.msra.mxu0 0.0
    %204 = vmatprep.subr.mxu0 0.0
    %205 = vmatpush2.msra.mxu0 0.0
    %206 = vmatprep.subr.mxu0 0.0
    %207 = vmatpush2.msra.mxu0 0.0
    %208 = vmatprep.subr.mxu0 0.0
    %209 = vmatpush2.msra.mxu0 0.0
    %210 = vmatprep.subr.mxu0 0.0
    %211 = vmatpush2.msra.mxu0 0.0
    %212 = vmatprep.subr.mxu0 0.0
    %213 = vmatpush2.msra.mxu0 0.0
    %214 = vmatprep.subr.mxu0 0.0
    %215 = vmatpush2.msra.mxu0 0.0
    %216 = vmatprep.mubr.f32.mxu0 0.0
    %217 = vmatmul.mubr.f32.gmra.mxu0 %v150
    %v218 = vpop.f32.mrf.mxu0
    %v219 = vadd.f32 0.0, %v218
    %v220 = vpop.f32.mrf.mxu0
    %221 = vdwg.mxu0
    %v222 = vld [vmem:[%s4] sm:$0xff]
    %v223 = vmul.f32 %v219, %v222
    %v224 = vld [vmem:[%s5] sm:$0xff]
    %v225 = vld [vmem:[%s5 + $0x8] sm:$0xff]
    %v226 = vld [vmem:[%s5 + $0x10] sm:$0xff]
    %v227 = vld [vmem:[%s5 + $0x18] sm:$0xff]
    %v228 = vld [vmem:[%s5 + $0x20] sm:$0xff]
    %v229 = vld [vmem:[%s5 + $0x28] sm:$0xff]
    %v230 = vld [vmem:[%s5 + $0x30] sm:$0xff]
    %v231 = vld [vmem:[%s5 + $0x38] sm:$0xff]
    %v233 = vsel %vm148, %v223, 0
    %235 = vmatprep.subr.mxu0 0.0
    %236 = vmatpush1.msra.mxu0 0.0
    %237 = vmatprep.subr.mxu0 0.0
    %238 = vmatpush1.msra.mxu0 0.0
    %239 = vmatprep.subr.mxu0 0.0
    %240 = vmatpush1.msra.mxu0 0.0
    %241 = vmatprep.subr.mxu0 0.0
    %242 = vmatpush1.msra.mxu0 0.0
    %243 = vmatprep.subr.mxu0 0.0
    %244 = vmatpush1.msra.mxu0 0.0
    %245 = vmatprep.subr.mxu0 0.0
    %246 = vmatpush1.msra.mxu0 0.0
    %247 = vmatprep.subr.mxu0 0.0
    %248 = vmatpush1.msra.mxu0 0.0
    %249 = vmatprep.subr.mxu0 0.0
    %250 = vmatpush1.msra.mxu0 0.0
    %251 = vmatprep.subr.mxu0 0.0
    %252 = vmatpush1.msra.mxu0 %v231
    %253 = vmatprep.subr.mxu0 0.0
    %254 = vmatpush1.msra.mxu0 %v230
    %255 = vmatprep.subr.mxu0 0.0
    %256 = vmatpush1.msra.mxu0 %v229
    %257 = vmatprep.subr.mxu0 0.0
    %258 = vmatpush1.msra.mxu0 %v228
    %259 = vmatprep.subr.mxu0 0.0
    %260 = vmatpush1.msra.mxu0 %v227
    %261 = vmatprep.subr.mxu0 0.0
    %262 = vmatpush1.msra.mxu0 %v226
    %263 = vmatprep.subr.mxu0 0.0
    %264 = vmatpush1.msra.mxu0 %v225
    %265 = vmatprep.subr.mxu0 0.0
    %266 = vmatpush1.msra.mxu0 %v224
    %267 = vmatprep.subr.mxu0 0.0
    %268 = vmatpush2.msra.mxu0 0.0
    %269 = vmatprep.subr.mxu0 0.0
    %270 = vmatpush2.msra.mxu0 0.0
    %271 = vmatprep.subr.mxu0 0.0
    %272 = vmatpush2.msra.mxu0 0.0
    %273 = vmatprep.subr.mxu0 0.0
    %274 = vmatpush2.msra.mxu0 0.0
    %275 = vmatprep.subr.mxu0 0.0
    %276 = vmatpush2.msra.mxu0 0.0
    %277 = vmatprep.subr.mxu0 0.0
    %278 = vmatpush2.msra.mxu0 0.0
    %279 = vmatprep.subr.mxu0 0.0
    %280 = vmatpush2.msra.mxu0 0.0
    %281 = vmatprep.subr.mxu0 0.0
    %282 = vmatpush2.msra.mxu0 0.0
    %283 = vmatprep.subr.mxu0 0.0
    %284 = vmatpush2.msra.mxu0 0.0
    %285 = vmatprep.subr.mxu0 0.0
    %286 = vmatpush2.msra.mxu0 0.0
    %287 = vmatprep.subr.mxu0 0.0
    %288 = vmatpush2.msra.mxu0 0.0
    %289 = vmatprep.subr.mxu0 0.0
    %290 = vmatpush2.msra.mxu0 0.0
    %291 = vmatprep.subr.mxu0 0.0
    %292 = vmatpush2.msra.mxu0 0.0
    %293 = vmatprep.subr.mxu0 0.0
    %294 = vmatpush2.msra.mxu0 0.0
    %295 = vmatprep.subr.mxu0 0.0
    %296 = vmatpush2.msra.mxu0 0.0
    %297 = vmatprep.subr.mxu0 0.0
    %298 = vmatpush2.msra.mxu0 0.0
    %299 = vmatprep.mubr.f32.mxu0 0.0
    %300 = vmatmul.mubr.f32.gmra.mxu0 %v233
    %v301 = vpop.f32.mrf.mxu0
    %v302 = vadd.f32 0.0, %v301
    %v303 = vpop.f32.mrf.mxu0
    %304 = vdwg.mxu0
    %vm305 = vcmask 60416
    %v306 = vsel %vm305, %v302, 0.0
    %v307 = vrot.slane %v306, 4
    %v308 = vadd.f32 %v306, %v307
    %v309 = vrot.slane %v308, 2
    %v310 = vadd.f32 %v308, %v309
    %v311 = vrot.slane %v310, 1
    %v312 = vadd.f32 %v310, %v311
    %v314 = vrot.slane %v302, 4
    %v316 = vsel %vm305, %v314, 0.0
    %v317 = vrot.slane %v316, 4
    %v318 = vadd.f32 %v316, %v317
    %v319 = vrot.slane %v318, 2
    %v320 = vadd.f32 %v318, %v319
    %v321 = vrot.slane %v320, 1
    %v322 = vadd.f32 %v320, %v321
    %vm323 = vcmp.eq.s32.totalorder %v139, 0
    %v324 = vsel %vm323, 1, 0
    %v325 = vcvt.s32.f32 %v324
    %v326 = vmul.f32 %v325, %v312
    %v327 = vadd.f32 %v326, 0.0
    %v328 = vmul.f32 %v325, %v322
    %v329 = vadd.f32 %v328, 0.0
    %330 = vrot.lane.b32.xlu0 %v137, 64
    %v331 = vpop.permute.xlu0 %330
    %v332 = vsel %vm148, %v331, 0
    %334 = vmatprep.subr.mxu0 0.0
    %335 = vmatpush1.msra.mxu0 0.0
    %336 = vmatprep.subr.mxu0 0.0
    %337 = vmatpush1.msra.mxu0 0.0
    %338 = vmatprep.subr.mxu0 0.0
    %339 = vmatpush1.msra.mxu0 0.0
    %340 = vmatprep.subr.mxu0 0.0
    %341 = vmatpush1.msra.mxu0 0.0
    %342 = vmatprep.subr.mxu0 0.0
    %343 = vmatpush1.msra.mxu0 0.0
    %344 = vmatprep.subr.mxu0 0.0
    %345 = vmatpush1.msra.mxu0 0.0
    %346 = vmatprep.subr.mxu0 0.0
    %347 = vmatpush1.msra.mxu0 0.0
    %348 = vmatprep.subr.mxu0 0.0
    %349 = vmatpush1.msra.mxu0 0.0
    %350 = vmatprep.subr.mxu0 0.0
    %351 = vmatpush1.msra.mxu0 %v147
    %352 = vmatprep.subr.mxu0 0.0
    %353 = vmatpush1.msra.mxu0 %v146
    %354 = vmatprep.subr.mxu0 0.0
    %355 = vmatpush1.msra.mxu0 %v145
    %356 = vmatprep.subr.mxu0 0.0
    %357 = vmatpush1.msra.mxu0 %v144
    %358 = vmatprep.subr.mxu0 0.0
    %359 = vmatpush1.msra.mxu0 %v143
    %360 = vmatprep.subr.mxu0 0.0
    %361 = vmatpush1.msra.mxu0 %v142
    %362 = vmatprep.subr.mxu0 0.0
    %363 = vmatpush1.msra.mxu0 %v141
    %364 = vmatprep.subr.mxu0 0.0
    %365 = vmatpush1.msra.mxu0 %v140
    %366 = vmatprep.subr.mxu0 0.0
    %367 = vmatpush2.msra.mxu0 0.0
    %368 = vmatprep.subr.mxu0 0.0
    %369 = vmatpush2.msra.mxu0 0.0
    %370 = vmatprep.subr.mxu0 0.0
    %371 = vmatpush2.msra.mxu0 0.0
    %372 = vmatprep.subr.mxu0 0.0
    %373 = vmatpush2.msra.mxu0 0.0
    %374 = vmatprep.subr.mxu0 0.0
    %375 = vmatpush2.msra.mxu0 0.0
    %376 = vmatprep.subr.mxu0 0.0
    %377 = vmatpush2.msra.mxu0 0.0
    %378 = vmatprep.subr.mxu0 0.0
    %379 = vmatpush2.msra.mxu0 0.0
    %380 = vmatprep.subr.mxu0 0.0
    %381 = vmatpush2.msra.mxu0 0.0
    %382 = vmatprep.subr.mxu0 0.0
    %383 = vmatpush2.msra.mxu0 0.0
    %384 = vmatprep.subr.mxu0 0.0
    %385 = vmatpush2.msra.mxu0 0.0
    %386 = vmatprep.subr.mxu0 0.0
    %387 = vmatpush2.msra.mxu0 0.0
    %388 = vmatprep.subr.mxu0 0.0
    %389 = vmatpush2.msra.mxu0 0.0
    %390 = vmatprep.subr.mxu0 0.0
    %391 = vmatpush2.msra.mxu0 0.0
    %392 = vmatprep.subr.mxu0 0.0
    %393 = vmatpush2.msra.mxu0 0.0
    %394 = vmatprep.subr.mxu0 0.0
    %395 = vmatpush2.msra.mxu0 0.0
    %396 = vmatprep.subr.mxu0 0.0
    %397 = vmatpush2.msra.mxu0 0.0
    %398 = vmatprep.mubr.f32.mxu0 0.0
    %399 = vmatmul.mubr.f32.gmra.mxu0 %v332
    %v400 = vpop.f32.mrf.mxu0
    %v401 = vadd.f32 0.0, %v400
    %v402 = vpop.f32.mrf.mxu0
    %403 = vdwg.mxu0
    %v404 = vmul.f32 %v401, %v222
    %v406 = vsel %vm148, %v404, 0
    %408 = vmatprep.subr.mxu0 0.0
    %409 = vmatpush1.msra.mxu0 0.0
    %410 = vmatprep.subr.mxu0 0.0
    %411 = vmatpush1.msra.mxu0 0.0
    %412 = vmatprep.subr.mxu0 0.0
    %413 = vmatpush1.msra.mxu0 0.0
    %414 = vmatprep.subr.mxu0 0.0
    %415 = vmatpush1.msra.mxu0 0.0
    %416 = vmatprep.subr.mxu0 0.0
    %417 = vmatpush1.msra.mxu0 0.0
    %418 = vmatprep.subr.mxu0 0.0
    %419 = vmatpush1.msra.mxu0 0.0
    %420 = vmatprep.subr.mxu0 0.0
    %421 = vmatpush1.msra.mxu0 0.0
    %422 = vmatprep.subr.mxu0 0.0
    %423 = vmatpush1.msra.mxu0 0.0
    %424 = vmatprep.subr.mxu0 0.0
    %425 = vmatpush1.msra.mxu0 %v231
    %426 = vmatprep.subr.mxu0 0.0
    %427 = vmatpush1.msra.mxu0 %v230
    %428 = vmatprep.subr.mxu0 0.0
    %429 = vmatpush1.msra.mxu0 %v229
    %430 = vmatprep.subr.mxu0 0.0
    %431 = vmatpush1.msra.mxu0 %v228
    %432 = vmatprep.subr.mxu0 0.0
    %433 = vmatpush1.msra.mxu0 %v227
    %434 = vmatprep.subr.mxu0 0.0
    %435 = vmatpush1.msra.mxu0 %v226
    %436 = vmatprep.subr.mxu0 0.0
    %437 = vmatpush1.msra.mxu0 %v225
    %438 = vmatprep.subr.mxu0 0.0
    %439 = vmatpush1.msra.mxu0 %v224
    %440 = vmatprep.subr.mxu0 0.0
    %441 = vmatpush2.msra.mxu0 0.0
    %442 = vmatprep.subr.mxu0 0.0
    %443 = vmatpush2.msra.mxu0 0.0
    %444 = vmatprep.subr.mxu0 0.0
    %445 = vmatpush2.msra.mxu0 0.0
    %446 = vmatprep.subr.mxu0 0.0
    %447 = vmatpush2.msra.mxu0 0.0
    %448 = vmatprep.subr.mxu0 0.0
    %449 = vmatpush2.msra.mxu0 0.0
    %450 = vmatprep.subr.mxu0 0.0
    %451 = vmatpush2.msra.mxu0 0.0
    %452 = vmatprep.subr.mxu0 0.0
    %453 = vmatpush2.msra.mxu0 0.0
    %454 = vmatprep.subr.mxu0 0.0
    %455 = vmatpush2.msra.mxu0 0.0
    %456 = vmatprep.subr.mxu0 0.0
    %457 = vmatpush2.msra.mxu0 0.0
    %458 = vmatprep.subr.mxu0 0.0
    %459 = vmatpush2.msra.mxu0 0.0
    %460 = vmatprep.subr.mxu0 0.0
    %461 = vmatpush2.msra.mxu0 0.0
    %462 = vmatprep.subr.mxu0 0.0
    %463 = vmatpush2.msra.mxu0 0.0
    %464 = vmatprep.subr.mxu0 0.0
    %465 = vmatpush2.msra.mxu0 0.0
    %466 = vmatprep.subr.mxu0 0.0
    %467 = vmatpush2.msra.mxu0 0.0
    %468 = vmatprep.subr.mxu0 0.0
    %469 = vmatpush2.msra.mxu0 0.0
    %470 = vmatprep.subr.mxu0 0.0
    %471 = vmatpush2.msra.mxu0 0.0
    %472 = vmatprep.mubr.f32.mxu0 0.0
    %473 = vmatmul.mubr.f32.gmra.mxu0 %v406
    %v474 = vpop.f32.mrf.mxu0
    %v475 = vadd.f32 0.0, %v474
    %v476 = vpop.f32.mrf.mxu0
    %477 = vdwg.mxu0
    %v478 = vsel %vm305, %v475, 0.0
    %v479 = vrot.slane %v478, 4
    %v480 = vadd.f32 %v478, %v479
    %v481 = vrot.slane %v480, 2
    %v482 = vadd.f32 %v480, %v481
    %v483 = vrot.slane %v482, 1
    %v484 = vadd.f32 %v482, %v483
    %v486 = vrot.slane %v475, 4
    %v488 = vsel %vm305, %v486, 0.0
    %v489 = vrot.slane %v488, 4
    %v490 = vadd.f32 %v488, %v489
    %v491 = vrot.slane %v490, 2
    %v492 = vadd.f32 %v490, %v491
    %v493 = vrot.slane %v492, 1
    %v494 = vadd.f32 %v492, %v493
    %vm495 = vcmp.eq.s32.totalorder %v139, 1
    %v496 = vsel %vm495, 1, 0
    %v497 = vcvt.s32.f32 %v496
    %v498 = vmul.f32 %v497, %v484
    %v499 = vadd.f32 %v327, %v498
    %v500 = vmul.f32 %v497, %v494
    %v501 = vadd.f32 %v329, %v500
    %v502 = vld [vmem:[%s6] sm:$0x1]
    %v503 = vlaneseq
    %v504 = vshrl.u32 %v503, 7
    %v505 = vsub.s32 0, %v504
    %v506 = vrot.slane %v502, %v505
    %v507 = vadd.f32 %v499, %v506
    %v508 = vtanh.pop %v507
    %v509 = vld [vmem:[%s6 + $0x1] sm:$0x1]
    %v510 = vlaneseq
    %v511 = vshrl.u32 %v510, 7
    %v512 = vsub.s32 0, %v511
    %v513 = vrot.slane %v509, %v512
    %v514 = vadd.f32 %v501, %v513
    %v515 = vtanh.pop %v514
    %v516 = vmul.f32 %v508, 0.5
    %v517 = vmul.f32 %v516, 1.442695
    %v518 = vpow.pop %v517
    %v519 = vmul.f32 %v515, 0.5
    %v520 = vmul.f32 %v519, 1.442695
    %v521 = vpow.pop %v520
    %v522 = vld [vmem:[%s7] sm:$0x3]
    %v523 = vmul.f32 %v522, %v518
    %v524 = vadd.f32 %v523, %v508
    %v525 = vld [vmem:[%s7 + $0x2] sm:$0x3]
    %v526 = vmul.f32 %v525, %v521
    %v527 = vadd.f32 %v526, %v515
    %v528 = vmul.f32 %v518, %v518
    %v529 = vmul.f32 %v521, %v521
    %v530 = vmul.f32 %v528, %v528
    %v531 = vmul.f32 %v529, %v529
    %v532 = vsub.f32 %v508, %v515
    %v533 = vmul.f32 %v532, %v532
    %v534 = vadd.f32 %v530, %v533
    %v535 = vmul.f32 %v531, 2.0
    %v536 = vrcp.pop %v535
    %v537 = vmul.f32 %v534, %v536
    %v538 = vadd.f32 %v531, %v533
    %v539 = vmul.f32 %v530, 2.0
    %v540 = vrcp.pop %v539
    %v541 = vmul.f32 %v538, %v540
    %v542 = vadd.f32 %v537, %v541
    %v543 = vsub.f32 %v542, 1.0
    %vm544 = vcmask 58368
    %v545 = vsel %vm544, %v543, 0.0
    %546 = vadd.xlane.f32.xlu0 %v545
    %v547 = vpop.xlane.xlu0 %546
    %v548 = vrot.slane %v547, 4
    %v549 = vadd.f32 %v547, %v548
    %v550 = vrot.slane %v549, 2
    %v551 = vadd.f32 %v549, %v550
    %v552 = vrot.slane %v551, 1
    %v553 = vadd.f32 %v551, %v552
    %s554 = vtos %v553
    %s555 = smul.f32 %s554, 0.5
    %v556 = vsub.f32 0.0, %v524
    %v557 = vmax.f32 %v556, 0.0
    %v558 = vand.u32 2147483647, %v556
    %v559 = vsub.f32 0.0, %v558
    %v560 = vmul.f32 %v559, 1.442695
    %v561 = vpow.pop %v560
    %v562 = vadd.f32 %v561, 1.0
    %v563 = vlog2.pop %v562
    %v564 = vmul.f32 %v563, 0.6931472
    %v565 = vmul.f32 -0.5, %v561
    %v566 = vadd.f32 %v565, 1.0
    %v567 = vmul.f32 %v566, %v561
    %v568 = vand.u32 2147483647, %v561
    %vm569 = vcmp.lt.f32.partialorder %v568, 0.0004427343
    %v570 = vsel %vm569, %v567, %v564
    %v571 = vadd.f32 %v557, %v570
    %v572 = vmin.f32 %v571, 100.0
    %v573 = vsub.f32 0.0, %v572
    %v574 = vmax.f32 %v524, 0.0
    %v575 = vand.u32 2147483647, %v524
    %v576 = vsub.f32 0.0, %v575
    %v577 = vmul.f32 %v576, 1.442695
    %v578 = vpow.pop %v577
    %v579 = vadd.f32 %v578, 1.0
    %v580 = vlog2.pop %v579
    %v581 = vmul.f32 %v580, 0.6931472
    %v582 = vmul.f32 -0.5, %v578
    %v583 = vadd.f32 %v582, 1.0
    %v584 = vmul.f32 %v583, %v578
    %v585 = vand.u32 2147483647, %v578
    %vm586 = vcmp.lt.f32.partialorder %v585, 0.0004427343
    %v587 = vsel %vm586, %v584, %v581
    %v588 = vadd.f32 %v574, %v587
    %v589 = vmin.f32 %v588, 100.0
    %v590 = vsub.f32 0.0, %v589
    %v591 = vsub.f32 0.0, %v527
    %v592 = vmax.f32 %v591, 0.0
    %v593 = vand.u32 2147483647, %v591
    %v594 = vsub.f32 0.0, %v593
    %v595 = vmul.f32 %v594, 1.442695
    %v596 = vpow.pop %v595
    %v597 = vadd.f32 %v596, 1.0
    %v598 = vlog2.pop %v597
    %v599 = vmul.f32 %v598, 0.6931472
    %v600 = vmul.f32 -0.5, %v596
    %v601 = vadd.f32 %v600, 1.0
    %v602 = vmul.f32 %v601, %v596
    %v603 = vand.u32 2147483647, %v596
    %vm604 = vcmp.lt.f32.partialorder %v603, 0.0004427343
    %v605 = vsel %vm604, %v602, %v599
    %v606 = vadd.f32 %v592, %v605
    %v607 = vmin.f32 %v606, 100.0
    %v608 = vsub.f32 0.0, %v607
    %v609 = vmax.f32 %v527, 0.0
    %v610 = vand.u32 2147483647, %v527
    %v611 = vsub.f32 0.0, %v610
    %v612 = vmul.f32 %v611, 1.442695
    %v613 = vpow.pop %v612
    %v614 = vadd.f32 %v613, 1.0
    %v615 = vlog2.pop %v614
    %v616 = vmul.f32 %v615, 0.6931472
    %v617 = vmul.f32 -0.5, %v613
    %v618 = vadd.f32 %v617, 1.0
    %v619 = vmul.f32 %v618, %v613
    %v620 = vand.u32 2147483647, %v613
    %vm621 = vcmp.lt.f32.partialorder %v620, 0.0004427343
    %v622 = vsel %vm621, %v619, %v616
    %v623 = vadd.f32 %v609, %v622
    %v624 = vmin.f32 %v623, 100.0
    %v625 = vsub.f32 0.0, %v624
    %v626 = vmul.f32 %v573, 1.442695
    %v627 = vpow.pop %v626
    %v628 = vmul.f32 %v608, 1.442695
    %v629 = vpow.pop %v628
    %v630 = vmul.f32 %v629, %v573
    %v631 = vsub.f32 1.0, %v629
    %v632 = vmul.f32 %v631, %v590
    %v633 = vadd.f32 %v630, %v632
    %v634 = vsel %vm544, %v633, 0.0
    %635 = vadd.xlane.f32.xlu0 %v634
    %v636 = vpop.xlane.xlu0 %635
    %v637 = vrot.slane %v636, 4
    %v638 = vadd.f32 %v636, %v637
    %v639 = vrot.slane %v638, 2
    %v640 = vadd.f32 %v638, %v639
    %v641 = vrot.slane %v640, 1
    %v642 = vadd.f32 %v640, %v641
    %s643 = vtos %v642
    %s644 = ssub.f32 0.0, %s643
    %v645 = vmul.f32 %v627, %v608
    %v646 = vsub.f32 1.0, %v627
    %v647 = vmul.f32 %v646, %v625
    %v648 = vadd.f32 %v645, %v647
    %v649 = vsel %vm544, %v648, 0.0
    %650 = vadd.xlane.f32.xlu0 %v649
    %v651 = vpop.xlane.xlu0 %650
    %v652 = vrot.slane %v651, 4
    %v653 = vadd.f32 %v651, %v652
    %v654 = vrot.slane %v653, 2
    %v655 = vadd.f32 %v653, %v654
    %v656 = vrot.slane %v655, 1
    %v657 = vadd.f32 %v655, %v656
    %s658 = vtos %v657
    %s659 = ssub.f32 0.0, %s658
    %s660 = sadd.f32 %s644, %s659
    %s661 = ssub.f32 %s660, %s555
    %s662 = scalar_lea.smem [#allocation2], 0
    %663 = sst [smem:[%s662]] %s661
    %664 = vst.msk [vmem:[%s9] sm:$0x3] %vm544, %v524
    %665 = vst.msk [vmem:[%s9 + $0x2] sm:$0x3] %vm544, %v527
    // Predicated region
    $region34: #{mutual_info_reg_forward.1} parent=1 // pred_check
      _
    $region35: #{mutual_info_reg_forward.1} parent=1 // pred_check_branch
      %667 = sbr.rel (0) target = $region37
    $region36: #{mutual_info_reg_forward.1} parent=1 // pred_region
      %s669 = ssub.s32 16, 16
      %670 = vsyncadd [#allocation3], %s669
      %673 = dma.smem_to_hbm [#allocation2], 16, %s8, [#allocation3]
    $region37: #{mutual_info_reg_forward.1} parent=1 // pred_fallthru
      _
    // Predicated region
    $region38: #{mutual_info_reg_forward.1} parent=1 // pred_check
      _
    $region39: #{mutual_info_reg_forward.1} parent=1 // pred_check_branch
      %675 = sbr.rel (0) target = $region41
    $region40: #{mutual_info_reg_forward.1} parent=1 // pred_region
      _
    $region41: #{mutual_info_reg_forward.1} parent=1 // pred_fallthru
      _
    // Predicated region
    $region42: #{mutual_info_reg_forward.1} parent=1 // pred_check
      _
    $region43: #{mutual_info_reg_forward.1} parent=1 // pred_check_branch
      %677 = sbr.rel (0) target = $region45
    $region44: #{mutual_info_reg_forward.1} parent=1 // pred_region
      %678 = dma.done [#allocation3], 16
    $region45: #{mutual_info_reg_forward.1} parent=1 // pred_fallthru
      _
    // Predicated region
    $region46: #{mutual_info_reg_forward.1} parent=1 // pred_check
      _
    $region47: #{mutual_info_reg_forward.1} parent=1 // pred_check_branch
      %680 = sbr.rel (0) target = $region49
    $region48: #{mutual_info_reg_forward.1} parent=1 // pred_region
      _
    $region49: #{mutual_info_reg_forward.1} parent=1 // pred_fallthru
      _
    %681 = sfence
    %682 = vsyncpa [#allocation3], 1

</llo_original>
